<compile_context>
chip_gen: v7x
topology: tpu7x:2x2x1
jax: 0.10.0
libtpu: 0.0.40
codegen_flags: <defaults>
</compile_context>

<pallas_src>
import jax
import jax.numpy as jnp
from jax.experimental import pallas as pl
from jax.experimental.pallas import tpu as pltpu

EPS = 1e-5

_VMEM_LIMIT = 32 * 1024 * 1024          # explicit scoped-VMEM request (portable v5e/v6e/v7x)
_TILE_VMEM_BUDGET = 16 * 1024 * 1024    # budget for double-buffered in + out row tiles
_RESIDENT_BYTES = 8 * 1024 * 1024       # below this (x + out in f32) use fused single-pass path


def _round_up(a, b):
    return ((a + b - 1) // b) * b


# ---------------------------------------------------------------------------
# Streaming two-phase kernels (large slabs)
# ---------------------------------------------------------------------------

def _stats_kernel(x_ref, sum_ref, ssq_ref):
    """Phase 1: accumulate per-lane sum and sum-of-squares over row tiles."""
    i = pl.program_id(0)

    @pl.when(i == 0)
    def _():
        sum_ref[...] = jnp.zeros_like(sum_ref)
        ssq_ref[...] = jnp.zeros_like(ssq_ref)

    x = x_ref[...].astype(jnp.float32)
    sum_ref[...] += jnp.sum(x, axis=0, keepdims=True)
    ssq_ref[...] += jnp.sum(x * x, axis=0, keepdims=True)


def _normalize_kernel(scale_ref, shift_ref, x_ref, o_ref):
    """Phase 2: y = x * scale + shift (gamma/beta/mean/rsqrt folded into scale/shift)."""
    x = x_ref[...].astype(jnp.float32)
    o_ref[...] = (x * scale_ref[...] + shift_ref[...]).astype(o_ref.dtype)


# ---------------------------------------------------------------------------
# Resident fused kernel (slab fits comfortably in VMEM): read x once, write once.
# ---------------------------------------------------------------------------

def _resident_kernel(gamma_ref, beta_ref, foldn_ref, x_ref, o_ref):
    x = x_ref[...].astype(jnp.float32)
    s = jnp.sum(x, axis=0, keepdims=True)        # (1, Ep) per-lane sum
    q = jnp.sum(x * x, axis=0, keepdims=True)    # (1, Ep) per-lane sum of squares
    # Fold the k lane-groups, divide by the true row count N, and re-broadcast the
    # stats to every lane group in one small MXU matmul (fold matrix already / N).
    foldn = foldn_ref[...]
    mean = jnp.dot(s, foldn, preferred_element_type=jnp.float32)   # (1, Ep)
    msq = jnp.dot(q, foldn, preferred_element_type=jnp.float32)    # (1, Ep)
    var = jnp.maximum(msq - mean * mean, 0.0)                      # biased variance
    scale = gamma_ref[...] * jax.lax.rsqrt(var + EPS)
    shift = beta_ref[...] - mean * scale
    o_ref[...] = (x * scale + shift).astype(o_ref.dtype)


# ---------------------------------------------------------------------------
# Wrapper
# ---------------------------------------------------------------------------

def custom_batchnorm(x, gamma, beta, *, force_streaming=False):
    """x: (batch, state, emb); gamma, beta: (emb,). Returns (batch, state, emb)."""
    assert x.ndim == 3, "Only x=(batch, state, emb) case is implemented"
    B, S, E = x.shape
    N = B * S

    # ---- lane-dense packing: make the last (lane) dim a multiple of 128 ----
    if E <= 128 and 128 % E == 0:
        k = 128 // E
    else:
        k = 1  # TODO(synk): emb not dividing 128 stays lane-sparse (still correct)
    Ep = k * E

    # ---- row-tile sizing against the VMEM budget (double-buffered in + out) ----
    np_needed = pl.cdiv(N, k)
    max_tile = max(8, (_TILE_VMEM_BUDGET // (4 * 2 * 2 * Ep)) // 8 * 8)
    tile_n = min(1024, max_tile, _round_up(np_needed, 8))
    np_pad = _round_up(np_needed, tile_n)
    n_pad = np_pad * k

    x2d = x.reshape(N, E)
    if n_pad != N:
        x2d = jnp.pad(x2d, ((0, n_pad - N), (0, 0)))   # zero rows: no effect on sums
    xp = x2d.reshape(np_pad, Ep)

    gamma_f = gamma.astype(jnp.float32)
    beta_f = beta.astype(jnp.float32)

    resident_ok = (np_pad * Ep * 4 * 2) <= _RESIDENT_BYTES and not force_streaming

    if resident_ok:
        # ---------------- fused single-pass path ----------------
        gamma_p = jnp.tile(gamma_f, k).reshape(1, Ep)
        beta_p = jnp.tile(beta_f, k).reshape(1, Ep)
        foldn = jnp.tile(jnp.eye(E, dtype=jnp.float32), (k, k)) / float(N)
        outp = pl.pallas_call(
            _resident_kernel,
            out_shape=jax.ShapeDtypeStruct((np_pad, Ep), x.dtype),
            grid_spec=pltpu.PrefetchScalarGridSpec(
                num_scalar_prefetch=0,
                grid=(1,),
                in_specs=[
                    pl.BlockSpec((1, Ep), lambda i: (0, 0)),
                    pl.BlockSpec((1, Ep), lambda i: (0, 0)),
                    pl.BlockSpec((Ep, Ep), lambda i: (0, 0)),
                    pl.BlockSpec((np_pad, Ep), lambda i: (0, 0)),
                ],
                out_specs=pl.BlockSpec((np_pad, Ep), lambda i: (0, 0)),
            ),
            compiler_params=pltpu.CompilerParams(
                dimension_semantics=("arbitrary",),
                vmem_limit_bytes=_VMEM_LIMIT,
            ),
        )(gamma_p, beta_p, foldn, xp)
    else:
        # ---------------- streaming two-phase path ----------------
        n_tiles = np_pad // tile_n

        # Phase 1: per-lane sum / sum-of-squares accumulated across row tiles.
        sums, ssqs = pl.pallas_call(
            _stats_kernel,
            out_shape=(jax.ShapeDtypeStruct((1, Ep), jnp.float32),
                       jax.ShapeDtypeStruct((1, Ep), jnp.float32)),
            grid_spec=pltpu.PrefetchScalarGridSpec(
                num_scalar_prefetch=0,
                grid=(n_tiles,),
                in_specs=[pl.BlockSpec((tile_n, Ep), lambda i: (i, 0))],
                out_specs=(pl.BlockSpec((1, Ep), lambda i: (0, 0)),
                           pl.BlockSpec((1, Ep), lambda i: (0, 0))),
            ),
            compiler_params=pltpu.CompilerParams(
                dimension_semantics=("arbitrary",),
                vmem_limit_bytes=_VMEM_LIMIT,
            ),
        )(xp)

        # Fold lane groups and compute per-channel scale/shift (tiny (E,) math).
        tot = jnp.sum(sums.reshape(k, E), axis=0)
        tot_sq = jnp.sum(ssqs.reshape(k, E), axis=0)
        mean = tot / float(N)
        var = jnp.maximum(tot_sq / float(N) - mean * mean, 0.0)   # biased variance
        scale = gamma_f * jax.lax.rsqrt(var + EPS)
        shift = beta_f - mean * scale
        scale_p = jnp.tile(scale, k).reshape(1, Ep)
        shift_p = jnp.tile(shift, k).reshape(1, Ep)

        # Phase 2: y = x * scale + shift, row-parallel (shards across v7x's 2 TCs).
        outp = pl.pallas_call(
            _normalize_kernel,
            out_shape=jax.ShapeDtypeStruct((np_pad, Ep), x.dtype),
            grid_spec=pltpu.PrefetchScalarGridSpec(
                num_scalar_prefetch=0,
                grid=(n_tiles,),
                in_specs=[
                    pl.BlockSpec((1, Ep), lambda i: (0, 0)),
                    pl.BlockSpec((1, Ep), lambda i: (0, 0)),
                    pl.BlockSpec((tile_n, Ep), lambda i: (i, 0)),
                ],
                out_specs=pl.BlockSpec((tile_n, Ep), lambda i: (i, 0)),
            ),
            compiler_params=pltpu.CompilerParams(
                dimension_semantics=("parallel",),
                vmem_limit_bytes=_VMEM_LIMIT,
            ),
        )(scale_p, shift_p, xp)

    out2d = outp.reshape(n_pad, E)[:N]
    return out2d.reshape(B, S, E)


def _reference(x, gamma, beta):
    # Pure-JAX reference of the PyTorch forward (training-mode BatchNorm1d).
    B, S, E = x.shape
    x2d = x.reshape(B * S, E).astype(jnp.float32)
    mean = jnp.mean(x2d, axis=0, keepdims=True)
    var = jnp.mean((x2d - mean) ** 2, axis=0, keepdims=True)
    y = (x2d - mean) / jnp.sqrt(var + EPS) * gamma.astype(jnp.float32) + beta.astype(jnp.float32)
    return y.reshape(B, S, E).astype(x.dtype)


if __name__ == "__main__":
    key = jax.random.PRNGKey(0)
    k0, k1, k2, k3 = jax.random.split(key, 4)

    # Module-default parameters (BatchNorm1d init: gamma=1, beta=0).
    batch, state, emb = 2, 8, 32
    x = jax.random.normal(k0, (batch, state, emb), dtype=jnp.float32)
    gamma = jnp.ones((emb,), dtype=jnp.float32)
    beta = jnp.zeros((emb,), dtype=jnp.float32)
    ref = _reference(x, gamma, beta)

    # Resident fused fast path.
    out_res = jax.block_until_ready(custom_batchnorm(x, gamma, beta))
    assert out_res.shape == (batch, state, emb)
    assert jnp.allclose(out_res, ref, atol=1e-4, rtol=1e-4)

    # Streaming two-phase path (exercised explicitly on the same input).
    out_str = jax.block_until_ready(custom_batchnorm(x, gamma, beta, force_streaming=True))
    assert jnp.allclose(out_str, ref, atol=1e-4, rtol=1e-4)

    # Non-trivial affine params + row count not divisible by the packing factor.
    b2, s2 = 3, 5
    x2 = jax.random.normal(k1, (b2, s2, emb), dtype=jnp.float32)
    g2 = 1.0 + 0.1 * jax.random.normal(k2, (emb,), dtype=jnp.float32)
    bt2 = 0.1 * jax.random.normal(k3, (emb,), dtype=jnp.float32)
    ref2 = _reference(x2, g2, bt2)
    out2a = jax.block_until_ready(custom_batchnorm(x2, g2, bt2))
    out2b = jax.block_until_ready(custom_batchnorm(x2, g2, bt2, force_streaming=True))
    assert jnp.allclose(out2a, ref2, atol=1e-4, rtol=1e-4)
    assert jnp.allclose(out2b, ref2, atol=1e-4, rtol=1e-4)

    print("KERNEL_OK")
</pallas_src>

<mosaic_0001>
module attributes {stable_mosaic.version = 11 : i64} {
  func.func @_resident_kernel(%arg0: i32, %arg1: memref<1x128xf32, #tpu.memory_space<vmem>>, %arg2: memref<1x128xf32, #tpu.memory_space<vmem>>, %arg3: memref<128x128xf32, #tpu.memory_space<vmem>>, %arg4: memref<8x128xf32, #tpu.memory_space<vmem>>, %arg5: memref<8x128xf32, #tpu.memory_space<vmem>>) attributes {dimension_semantics = [#tpu.dimension_semantics<arbitrary>], iteration_bounds = array<i64: 1>, scalar_prefetch = 0 : i64, scratch_operands = 0 : i64, tpu.core_type = #tpu.core_type<tc>, window_params = [{pipeline_mode = #tpu.pipeline_mode<synchronous>, transform_indices = @transform_0, window_bounds = array<i64: 1, 128>}, {pipeline_mode = #tpu.pipeline_mode<synchronous>, transform_indices = @transform_1, window_bounds = array<i64: 1, 128>}, {pipeline_mode = #tpu.pipeline_mode<synchronous>, transform_indices = @transform_2, window_bounds = array<i64: 128, 128>}, {pipeline_mode = #tpu.pipeline_mode<synchronous>, transform_indices = @transform_3, window_bounds = array<i64: 8, 128>}, {pipeline_mode = #tpu.pipeline_mode<synchronous>, transform_indices = @transform_4, window_bounds = array<i64: 8, 128>}]} {
    %c0 = arith.constant 0 : index
    %c0_0 = arith.constant 0 : index
    %0 = vector.load %arg4[%c0, %c0_0] : memref<8x128xf32, #tpu.memory_space<vmem>>, vector<8x128xf32>
    %cst = arith.constant dense<0.000000e+00> : vector<128xf32>
    %1 = vector.multi_reduction <add>, %0, %cst [0] : vector<8x128xf32> to vector<128xf32>
    %2 = vector.shape_cast %1 : vector<128xf32> to vector<1x128xf32>
    %3 = arith.mulf %0, %0 : vector<8x128xf32>
    %cst_1 = arith.constant dense<0.000000e+00> : vector<128xf32>
    %4 = vector.multi_reduction <add>, %3, %cst_1 [0] : vector<8x128xf32> to vector<128xf32>
    %5 = vector.shape_cast %4 : vector<128xf32> to vector<1x128xf32>
    %c0_2 = arith.constant 0 : index
    %c0_3 = arith.constant 0 : index
    %6 = vector.load %arg3[%c0_2, %c0_3] : memref<128x128xf32, #tpu.memory_space<vmem>>, vector<128x128xf32>
    %cst_4 = arith.constant dense<0.000000e+00> : vector<1x128xf32>
    %7 = tpu.matmul %2, %6, %cst_4 {dimension_numbers = #tpu.dot_dimension_numbers<[1], [0], [0], [1], [0, 0, 1, 1], [], []>} : vector<1x128xf32>, vector<128x128xf32>, vector<1x128xf32> -> vector<1x128xf32>
    %cst_5 = arith.constant dense<0.000000e+00> : vector<1x128xf32>
    %8 = tpu.matmul %5, %6, %cst_5 {dimension_numbers = #tpu.dot_dimension_numbers<[1], [0], [0], [1], [0, 0, 1, 1], [], []>} : vector<1x128xf32>, vector<128x128xf32>, vector<1x128xf32> -> vector<1x128xf32>
    %9 = arith.mulf %7, %7 : vector<1x128xf32>
    %10 = arith.subf %8, %9 : vector<1x128xf32>
    %cst_6 = arith.constant 0.000000e+00 : f32
    %11 = vector.broadcast %cst_6 : f32 to vector<1x128xf32>
    %12 = arith.maximumf %10, %11 : vector<1x128xf32>
    %c0_7 = arith.constant 0 : index
    %c0_8 = arith.constant 0 : index
    %13 = vector.load %arg1[%c0_7, %c0_8] : memref<1x128xf32, #tpu.memory_space<vmem>>, vector<1x128xf32>
    %cst_9 = arith.constant 9.99999974E-6 : f32
    %14 = vector.broadcast %cst_9 : f32 to vector<1x128xf32>
    %15 = arith.addf %12, %14 : vector<1x128xf32>
    %16 = math.rsqrt %15 : vector<1x128xf32>
    %17 = arith.mulf %13, %16 : vector<1x128xf32>
    %c0_10 = arith.constant 0 : index
    %c0_11 = arith.constant 0 : index
    %18 = vector.load %arg2[%c0_10, %c0_11] : memref<1x128xf32, #tpu.memory_space<vmem>>, vector<1x128xf32>
    %19 = arith.mulf %7, %17 : vector<1x128xf32>
    %20 = arith.subf %18, %19 : vector<1x128xf32>
    %21 = vector.broadcast %17 : vector<1x128xf32> to vector<8x128xf32>
    %22 = arith.mulf %0, %21 : vector<8x128xf32>
    %23 = vector.broadcast %20 : vector<1x128xf32> to vector<8x128xf32>
    %24 = arith.addf %22, %23 : vector<8x128xf32>
    %c0_12 = arith.constant 0 : index
    %c0_13 = arith.constant 0 : index
    %25 = vector.load %arg5[%c0_12, %c0_13] : memref<8x128xf32, #tpu.memory_space<vmem>>, vector<8x128xf32>
    tpu.vector_store %arg5[%c0_12, %c0_13], %24 {strides = array<i32>} : memref<8x128xf32, #tpu.memory_space<vmem>>, vector<8x128xf32>,
    return
  }
  func.func @transform_0(%arg0: i32) -> (i32, i32) {
    %c0_i32 = arith.constant 0 : i32
    %c0_i32_0 = arith.constant 0 : i32
    %c0_i32_1 = arith.constant 0 : i32
    return %c0_i32, %c0_i32_0 : i32, i32
  }
  func.func @transform_1(%arg0: i32) -> (i32, i32) {
    %c0_i32 = arith.constant 0 : i32
    %c0_i32_0 = arith.constant 0 : i32
    %c0_i32_1 = arith.constant 0 : i32
    return %c0_i32, %c0_i32_0 : i32, i32
  }
  func.func @transform_2(%arg0: i32) -> (i32, i32) {
    %c0_i32 = arith.constant 0 : i32
    %c0_i32_0 = arith.constant 0 : i32
    %c0_i32_1 = arith.constant 0 : i32
    return %c0_i32, %c0_i32_0 : i32, i32
  }
  func.func @transform_3(%arg0: i32) -> (i32, i32) {
    %c0_i32 = arith.constant 0 : i32
    %c0_i32_0 = arith.constant 0 : i32
    %c0_i32_1 = arith.constant 0 : i32
    return %c0_i32, %c0_i32_0 : i32, i32
  }
  func.func @transform_4(%arg0: i32) -> (i32, i32) {
    %c0_i32 = arith.constant 0 : i32
    %c0_i32_0 = arith.constant 0 : i32
    %c0_i32_1 = arith.constant 0 : i32
    return %c0_i32, %c0_i32_0 : i32, i32
  }
}

</mosaic_0001>

<llo_original>
// kernel: tpu_custom_call.1
$region0: #{tpu_custom_call.1}
  #allocation0 [shape = 'u32[]', space=smem, size = 0x4, offset = 0x4, fixed_abs, tag = 'smem constant byte address 0x4 - core index']
  #allocation1 [shape = 'u32[144,128]{1,0:T(1,128)}', space=vmem, size = 0x12000, scoped, tag = 'internal scratch']
  %s0 = inlined_call_operand.hbm [shape: f32[1,128], index: 0, kind: input, shape index: {}]
  %s1 = inlined_call_operand.vmem [shape: f32[1,128], index: 1, kind: input, shape index: {}]
  %s2 = inlined_call_operand.hbm [shape: f32[128,128], index: 2, kind: input, shape index: {}]
  %s3 = inlined_call_operand.vmem [shape: f32[8,128], index: 3, kind: input, shape index: {}]
  %s4 = inlined_call_operand.hbm [shape: f32[8,128], index: 4, kind: output, shape index: {}]
  %s5 = sld [smem:[#allocation0]]
  $region34: #{tpu_custom_call.1} parent=0
    _
  %s7 = ssub.s32 1, %s5
  %s8 = scalar_select 0, %s7, %s5
  $region1: #{tpu_custom_call.1} parent=0
    #allocation2 [shape = 'u8[512]{0}', space=vmem, size = 0x400, scoped, tag = 'input window, operand 0, single buffered']
    #allocation3 [shape = 's32[1]{0}', space=sflag, size = 0x4, scoped, tag = 'scoped memory for tpu_custom_call.1']
    #allocation4 [shape = 's32[1]{0}', space=sflag, size = 0x4, scoped, tag = 'scoped memory for tpu_custom_call.1']
    #allocation5 [shape = 'u8[65536]{0}', space=vmem, size = 0x10000, scoped, tag = 'input window, operand 2, single buffered']
    #allocation6 [shape = 's32[1]{0}', space=sflag, size = 0x4, scoped, tag = 'scoped memory for tpu_custom_call.1']
    #allocation7 [shape = 'u8[4096]{0}', space=vmem, size = 0x1000, scoped, tag = 'output window, operand 0, single buffered']
    %9 = vsyncpa [#allocation3], 0
    %10 = vsyncpa [#allocation6], 0
    %11 = vsyncpa [#allocation4], 0
    // Predicated region
    $region2: #{tpu_custom_call.1} parent=1 // pred_check
      _
    $region3: #{tpu_custom_call.1} parent=1 // pred_check_branch
      %13 = sbr.rel (0) target = $region5
    $region4: #{tpu_custom_call.1} parent=1 // pred_region
      %s15 = ssub.s32 16, 16
      %16 = vsyncadd [#allocation3], %s15
      %s18 = sshll.u32 [#allocation2], 4
      %s19 = int_to_ptr.vmem [resolvable:$true] %s18
      %21 = dma.hbm_to_vmem [thread:$0]  %s0, 16, %s19, [#allocation3]
    $region5: #{tpu_custom_call.1} parent=1 // pred_fallthru
      _
    // Predicated region
    $region6: #{tpu_custom_call.1} parent=1 // pred_check
      _
    $region7: #{tpu_custom_call.1} parent=1 // pred_check_branch
      %23 = sbr.rel (0) target = $region9
    $region8: #{tpu_custom_call.1} parent=1 // pred_region
      _
    $region9: #{tpu_custom_call.1} parent=1 // pred_fallthru
      _
    // Predicated region
    $region10: #{tpu_custom_call.1} parent=1 // pred_check
      _
    $region11: #{tpu_custom_call.1} parent=1 // pred_check_branch
      %25 = sbr.rel (0) target = $region13
    $region12: #{tpu_custom_call.1} parent=1 // pred_region
      %s27 = ssub.s32 2048, 2048
      %28 = vsyncadd [#allocation6], %s27
      %s29 = sshll.u32 [#allocation5], 4
      %s30 = int_to_ptr.vmem [resolvable:$true] %s29
      %35 = dma.hbm_to_vmem [thread:$0]  %s2, 2048, %s30, [#allocation6], 128, 128, 8
    $region13: #{tpu_custom_call.1} parent=1 // pred_fallthru
      _
    // Predicated region
    $region14: #{tpu_custom_call.1} parent=1 // pred_check
      _
    $region15: #{tpu_custom_call.1} parent=1 // pred_check_branch
      %37 = sbr.rel (0) target = $region17
    $region16: #{tpu_custom_call.1} parent=1 // pred_region
      _
    $region17: #{tpu_custom_call.1} parent=1 // pred_fallthru
      _
    // Predicated region
    $region18: #{tpu_custom_call.1} parent=1 // pred_check
      _
    $region19: #{tpu_custom_call.1} parent=1 // pred_check_branch
      %39 = sbr.rel (0) target = $region21
    $region20: #{tpu_custom_call.1} parent=1 // pred_region
      %40 = dma.done [#allocation3], 16
    $region21: #{tpu_custom_call.1} parent=1 // pred_fallthru
      _
    // Predicated region
    $region22: #{tpu_custom_call.1} parent=1 // pred_check
      _
    $region23: #{tpu_custom_call.1} parent=1 // pred_check_branch
      %42 = sbr.rel (0) target = $region25
    $region24: #{tpu_custom_call.1} parent=1 // pred_region
      %43 = dma.done [#allocation6], 2048
    $region25: #{tpu_custom_call.1} parent=1 // pred_fallthru
      _
    %v44 = vld [vmem:[%s3] sm:$0xff]
    %v45 = vrot.slane %v44, 4
    %v46 = vadd.f32 %v44, %v45
    %v47 = vrot.slane %v46, 2
    %v48 = vadd.f32 %v46, %v47
    %v49 = vrot.slane %v48, 1
    %v50 = vadd.f32 %v48, %v49
    %v51 = vmul.f32 %v44, %v44
    %v52 = vrot.slane %v51, 4
    %v53 = vadd.f32 %v51, %v52
    %v54 = vrot.slane %v53, 2
    %v55 = vadd.f32 %v53, %v54
    %v56 = vrot.slane %v55, 1
    %v57 = vadd.f32 %v55, %v56
    %v58 = vld [vmem:[#allocation5] sm:$0xff]
    %v59 = vld [vmem:[#allocation5 + $0x8] sm:$0xff]
    %v60 = vld [vmem:[#allocation5 + $0x10] sm:$0xff]
    %v61 = vld [vmem:[#allocation5 + $0x18] sm:$0xff]
    %v62 = vld [vmem:[#allocation5 + $0x20] sm:$0xff]
    %v63 = vld [vmem:[#allocation5 + $0x28] sm:$0xff]
    %v64 = vld [vmem:[#allocation5 + $0x30] sm:$0xff]
    %v65 = vld [vmem:[#allocation5 + $0x38] sm:$0xff]
    %v66 = vld [vmem:[#allocation5 + $0x40] sm:$0xff]
    %v67 = vld [vmem:[#allocation5 + $0x48] sm:$0xff]
    %v68 = vld [vmem:[#allocation5 + $0x50] sm:$0xff]
    %v69 = vld [vmem:[#allocation5 + $0x58] sm:$0xff]
    %v70 = vld [vmem:[#allocation5 + $0x60] sm:$0xff]
    %v71 = vld [vmem:[#allocation5 + $0x68] sm:$0xff]
    %v72 = vld [vmem:[#allocation5 + $0x70] sm:$0xff]
    %v73 = vld [vmem:[#allocation5 + $0x78] sm:$0xff]
    %74 = vmatprep.subr.mxu0 0.0
    %75 = vmatpush1.msra.mxu0 %v58
    %76 = vmatprep.subr.mxu0 0.0
    %77 = vmatpush1.msra.mxu0 %v59
    %78 = vmatprep.subr.mxu0 0.0
    %79 = vmatpush1.msra.mxu0 %v60
    %80 = vmatprep.subr.mxu0 0.0
    %81 = vmatpush1.msra.mxu0 %v61
    %82 = vmatprep.subr.mxu0 0.0
    %83 = vmatpush1.msra.mxu0 %v62
    %84 = vmatprep.subr.mxu0 0.0
    %85 = vmatpush1.msra.mxu0 %v63
    %86 = vmatprep.subr.mxu0 0.0
    %87 = vmatpush1.msra.mxu0 %v64
    %88 = vmatprep.subr.mxu0 0.0
    %89 = vmatpush1.msra.mxu0 %v65
    %90 = vmatprep.subr.mxu0 0.0
    %91 = vmatpush1.msra.mxu0 %v66
    %92 = vmatprep.subr.mxu0 0.0
    %93 = vmatpush1.msra.mxu0 %v67
    %94 = vmatprep.subr.mxu0 0.0
    %95 = vmatpush1.msra.mxu0 %v68
    %96 = vmatprep.subr.mxu0 0.0
    %97 = vmatpush1.msra.mxu0 %v69
    %98 = vmatprep.subr.mxu0 0.0
    %99 = vmatpush1.msra.mxu0 %v70
    %100 = vmatprep.subr.mxu0 0.0
    %101 = vmatpush1.msra.mxu0 %v71
    %102 = vmatprep.subr.mxu0 0.0
    %103 = vmatpush1.msra.mxu0 %v72
    %104 = vmatprep.subr.mxu0 0.0
    %105 = vmatpush1.msra.mxu0 %v73
    %106 = vmatprep.subr.mxu0 0.0
    %107 = vmatpush1.msra.mxu0 0.0
    %108 = vmatprep.subr.mxu0 0.0
    %109 = vmatpush1.msra.mxu0 0.0
    %110 = vmatprep.subr.mxu0 0.0
    %111 = vmatpush1.msra.mxu0 0.0
    %112 = vmatprep.subr.mxu0 0.0
    %113 = vmatpush1.msra.mxu0 0.0
    %114 = vmatprep.subr.mxu0 0.0
    %115 = vmatpush1.msra.mxu0 0.0
    %116 = vmatprep.subr.mxu0 0.0
    %117 = vmatpush1.msra.mxu0 0.0
    %118 = vmatprep.subr.mxu0 0.0
    %119 = vmatpush1.msra.mxu0 0.0
    %120 = vmatprep.subr.mxu0 0.0
    %121 = vmatpush1.msra.mxu0 0.0
    %122 = vmatprep.subr.mxu0 0.0
    %123 = vmatpush1.msra.mxu0 0.0
    %124 = vmatprep.subr.mxu0 0.0
    %125 = vmatpush1.msra.mxu0 0.0
    %126 = vmatprep.subr.mxu0 0.0
    %127 = vmatpush1.msra.mxu0 0.0
    %128 = vmatprep.subr.mxu0 0.0
    %129 = vmatpush1.msra.mxu0 0.0
    %130 = vmatprep.subr.mxu0 0.0
    %131 = vmatpush1.msra.mxu0 0.0
    %132 = vmatprep.subr.mxu0 0.0
    %133 = vmatpush1.msra.mxu0 0.0
    %134 = vmatprep.subr.mxu0 0.0
    %135 = vmatpush1.msra.mxu0 0.0
    %136 = vmatprep.subr.mxu0 0.0
    %137 = vmatpush1.msra.mxu0 0.0
    %138 = vmatprep.mubr.f32.mxu0 0.0
    %139 = vmatmul.mubr.f32.gmra.mrb[0].mxu0 %v50
    %v140 = vpop.f32.mrb[0].mxu0
    %v141 = vadd.f32 0.0, %v140
    %v142 = vpop.f32.mrb[0].mxu0
    %143 = vdwg.mxu0
    %144 = vmatprep.subr.mxu0 0.0
    %145 = vmatpush1.msra.mxu0 %v58
    %146 = vmatprep.subr.mxu0 0.0
    %147 = vmatpush1.msra.mxu0 %v59
    %148 = vmatprep.subr.mxu0 0.0
    %149 = vmatpush1.msra.mxu0 %v60
    %150 = vmatprep.subr.mxu0 0.0
    %151 = vmatpush1.msra.mxu0 %v61
    %152 = vmatprep.subr.mxu0 0.0
    %153 = vmatpush1.msra.mxu0 %v62
    %154 = vmatprep.subr.mxu0 0.0
    %155 = vmatpush1.msra.mxu0 %v63
    %156 = vmatprep.subr.mxu0 0.0
    %157 = vmatpush1.msra.mxu0 %v64
    %158 = vmatprep.subr.mxu0 0.0
    %159 = vmatpush1.msra.mxu0 %v65
    %160 = vmatprep.subr.mxu0 0.0
    %161 = vmatpush1.msra.mxu0 %v66
    %162 = vmatprep.subr.mxu0 0.0
    %163 = vmatpush1.msra.mxu0 %v67
    %164 = vmatprep.subr.mxu0 0.0
    %165 = vmatpush1.msra.mxu0 %v68
    %166 = vmatprep.subr.mxu0 0.0
    %167 = vmatpush1.msra.mxu0 %v69
    %168 = vmatprep.subr.mxu0 0.0
    %169 = vmatpush1.msra.mxu0 %v70
    %170 = vmatprep.subr.mxu0 0.0
    %171 = vmatpush1.msra.mxu0 %v71
    %172 = vmatprep.subr.mxu0 0.0
    %173 = vmatpush1.msra.mxu0 %v72
    %174 = vmatprep.subr.mxu0 0.0
    %175 = vmatpush1.msra.mxu0 %v73
    %176 = vmatprep.subr.mxu0 0.0
    %177 = vmatpush1.msra.mxu0 0.0
    %178 = vmatprep.subr.mxu0 0.0
    %179 = vmatpush1.msra.mxu0 0.0
    %180 = vmatprep.subr.mxu0 0.0
    %181 = vmatpush1.msra.mxu0 0.0
    %182 = vmatprep.subr.mxu0 0.0
    %183 = vmatpush1.msra.mxu0 0.0
    %184 = vmatprep.subr.mxu0 0.0
    %185 = vmatpush1.msra.mxu0 0.0
    %186 = vmatprep.subr.mxu0 0.0
    %187 = vmatpush1.msra.mxu0 0.0
    %188 = vmatprep.subr.mxu0 0.0
    %189 = vmatpush1.msra.mxu0 0.0
    %190 = vmatprep.subr.mxu0 0.0
    %191 = vmatpush1.msra.mxu0 0.0
    %192 = vmatprep.subr.mxu0 0.0
    %193 = vmatpush1.msra.mxu0 0.0
    %194 = vmatprep.subr.mxu0 0.0
    %195 = vmatpush1.msra.mxu0 0.0
    %196 = vmatprep.subr.mxu0 0.0
    %197 = vmatpush1.msra.mxu0 0.0
    %198 = vmatprep.subr.mxu0 0.0
    %199 = vmatpush1.msra.mxu0 0.0
    %200 = vmatprep.subr.mxu0 0.0
    %201 = vmatpush1.msra.mxu0 0.0
    %202 = vmatprep.subr.mxu0 0.0
    %203 = vmatpush1.msra.mxu0 0.0
    %204 = vmatprep.subr.mxu0 0.0
    %205 = vmatpush1.msra.mxu0 0.0
    %206 = vmatprep.subr.mxu0 0.0
    %207 = vmatpush1.msra.mxu0 0.0
    %208 = vmatprep.mubr.f32.mxu0 0.0
    %209 = vmatmul.mubr.f32.gmra.mrb[0].mxu0 %v57
    %v210 = vpop.f32.mrb[0].mxu0
    %v211 = vadd.f32 0.0, %v210
    %v212 = vpop.f32.mrb[0].mxu0
    %213 = vdwg.mxu0
    %v214 = vmul.f32 %v141, %v141
    %v215 = vsub.f32 %v211, %v214
    %v216 = vmax.f32 %v215, 0.0
    %v217 = vld [vmem:[#allocation2] sm:$0x1]
    %v218 = vadd.f32 %v216, 1e-05
    %v219 = vrsqrt.pop %v218
    %v220 = vmul.f32 %v217, %v219
    %v221 = vld [vmem:[%s1] sm:$0x1]
    %v222 = vmul.f32 %v141, %v220
    %v223 = vsub.f32 %v221, %v222
    %v225 = vlaneseq
    %v226 = vshrl.u32 %v225, 7
    %v227 = vsub.s32 0, %v226
    %v228 = vrot.slane %v220, %v227
    %v230 = vmul.f32 %v44, %v228
    %v232 = vlaneseq
    %v233 = vshrl.u32 %v232, 7
    %v234 = vsub.s32 0, %v233
    %v235 = vrot.slane %v223, %v234
    %v237 = vadd.f32 %v230, %v235
    %238 = vst [vmem:[#allocation7] sm:$0xff] %v237
    // Predicated region
    $region26: #{tpu_custom_call.1} parent=1 // pred_check
      _
    $region27: #{tpu_custom_call.1} parent=1 // pred_check_branch
      %240 = sbr.rel (0) target = $region29
    $region28: #{tpu_custom_call.1} parent=1 // pred_region
      %s242 = ssub.s32 128, 128
      %243 = vsyncadd [#allocation4], %s242
      %s245 = sshll.u32 [#allocation7], 4
      %s246 = int_to_ptr.vmem [resolvable:$true] %s245
      %248 = dma.vmem_to_hbm [thread:$0]  %s246, 128, %s4, [#allocation4]
    $region29: #{tpu_custom_call.1} parent=1 // pred_fallthru
      _
    // Predicated region
    $region30: #{tpu_custom_call.1} parent=1 // pred_check
      _
    $region31: #{tpu_custom_call.1} parent=1 // pred_check_branch
      %250 = sbr.rel (0) target = $region33
    $region32: #{tpu_custom_call.1} parent=1 // pred_region
      %251 = dma.done [#allocation4], 128
    $region33: #{tpu_custom_call.1} parent=1 // pred_fallthru
      _
    %252 = vsyncpa [#allocation3], 1
    %253 = vsyncpa [#allocation6], 1
    %254 = vsyncpa [#allocation4], 1

</llo_original>
